<compile_context>
chip_gen: v7x
topology: tpu7x:2x2x1
jax: 0.10.0
libtpu: 0.0.40
codegen_flags: <defaults>
</compile_context>

<pallas_src>
import jax
import jax.numpy as jnp
from jax.experimental import pallas as pl
from jax.experimental.pallas import tpu as pltpu

LANES = 128                 # vreg lane width (last dim)
SUBLANES = 8                # f32 sublane granularity
MAX_BLOCK_ROWS = 2048       # 2048x128 f32 = 1 MiB per input block
MIN_ROWS_PER_SPLIT = 1024   # shard reduction across 2 cores only for large N
TINY_N = 4096               # below this, plain XLA dot beats kernel launch cost


def _round_up(x: int, m: int) -> int:
    return ((x + m - 1) // m) * m


def _dot_kernel_single_step(x_ref, y_ref, o_ref):
    """Grid: (num_splits,).  Whole per-split slab fits in one block: no scratch,
    one VALU multiply pass, one XLU reduction, lane-dense unmasked store."""
    prod = x_ref[...].astype(jnp.float32) * y_ref[...].astype(jnp.float32)
    total = jnp.sum(prod)
    o_ref[...] = jnp.full((SUBLANES, LANES), total, dtype=jnp.float32)


def _dot_kernel_multi_step(x_ref, y_ref, o_ref, acc_ref):
    """Grid: (num_splits ["parallel"], steps ["arbitrary" reduction]).

    x_ref, y_ref: (block_rows, LANES) tiles in the input dtype.
    o_ref:        (SUBLANES, LANES) f32 per-split output block; the partial sum
                  is splatted across it (lane-dense, unmasked store) and read
                  back as o[::SUBLANES, 0] in the wrapper.
    acc_ref:      (block_rows, LANES) f32 vector accumulator (VALU-only updates,
                  single XLU reduction on the last step).
    """
    k = pl.program_id(1)

    # Cast to f32 in-register (HBM stays in the narrow input dtype).
    prod = x_ref[...].astype(jnp.float32) * y_ref[...].astype(jnp.float32)

    @pl.when(k == 0)
    def _():
        acc_ref[...] = prod          # init with first product (skips a zero fill)

    @pl.when(k > 0)
    def _():
        acc_ref[...] += prod

    @pl.when(k == pl.num_programs(1) - 1)
    def _():
        total = jnp.sum(acc_ref[...])          # single XLU reduction per split
        o_ref[...] = jnp.full((SUBLANES, LANES), total, dtype=jnp.float32)


def tor_network(input1: jax.Array, input2: jax.Array) -> jax.Array:
    """Equivalent of TorNetwork().forward(input1, input2) == torch.dot."""
    assert input1.ndim == 1 and input2.ndim == 1
    assert input1.shape == input2.shape
    n = input1.shape[0]
    out_dtype = jnp.result_type(input1.dtype, input2.dtype)

    # Tiny inputs: pallas_call launch + DMA setup dominates -> plain XLA dot.
    if n < TINY_N:
        return jnp.dot(input1.astype(jnp.float32),
                       input2.astype(jnp.float32)).astype(out_dtype)

    x, y = input1, input2                      # keep native dtype in HBM
    rows = pl.cdiv(n, LANES)

    # Shard the reduction across a leading parallel axis only when each half
    # is large (uses both TensorCores on v7x; harmless single extra step on
    # v5e/v6e).  Modest N (incl. the real 928x128 densenet weight) stays at 1.
    num_splits = 2 if rows >= 2 * MIN_ROWS_PER_SPLIT else 1

    rows_per_split = pl.cdiv(rows, num_splits)
    block_rows = min(_round_up(rows_per_split, SUBLANES), MAX_BLOCK_ROWS)
    steps = pl.cdiv(rows_per_split, block_rows)

    rows_padded = num_splits * steps * block_rows
    n_padded = rows_padded * LANES
    if n_padded != n:                          # pad only when actually needed
        pad = n_padded - n
        x = jnp.pad(x, (0, pad))
        y = jnp.pad(y, (0, pad))

    x2 = x.reshape(rows_padded, LANES)
    y2 = y.reshape(rows_padded, LANES)

    out_shape = jax.ShapeDtypeStruct((num_splits * SUBLANES, LANES), jnp.float32)
    cost = pl.CostEstimate(
        flops=2 * n,
        transcendentals=0,
        bytes_accessed=2 * n_padded * x2.dtype.itemsize
        + num_splits * SUBLANES * LANES * 4,
    )

    if steps == 1:
        # Whole per-split slab in one block: scratch-free specialized kernel.
        out = pl.pallas_call(
            _dot_kernel_single_step,
            out_shape=out_shape,
            grid_spec=pltpu.PrefetchScalarGridSpec(
                num_scalar_prefetch=0,
                grid=(num_splits,),
                in_specs=[
                    pl.BlockSpec((block_rows, LANES), lambda s: (s, 0)),
                    pl.BlockSpec((block_rows, LANES), lambda s: (s, 0)),
                ],
                out_specs=pl.BlockSpec((SUBLANES, LANES), lambda s: (s, 0)),
            ),
            compiler_params=pltpu.CompilerParams(
                dimension_semantics=("parallel",),
            ),
            cost_estimate=cost,
        )(x2, y2)
    else:
        def in_map(s, k):
            return (s * steps + k, 0)

        out = pl.pallas_call(
            _dot_kernel_multi_step,
            out_shape=out_shape,
            grid_spec=pltpu.PrefetchScalarGridSpec(
                num_scalar_prefetch=0,
                grid=(num_splits, steps),
                in_specs=[
                    pl.BlockSpec((block_rows, LANES), in_map),
                    pl.BlockSpec((block_rows, LANES), in_map),
                ],
                out_specs=pl.BlockSpec((SUBLANES, LANES), lambda s, k: (s, 0)),
                scratch_shapes=[pltpu.VMEM((block_rows, LANES), jnp.float32)],
            ),
            compiler_params=pltpu.CompilerParams(
                dimension_semantics=("parallel", "arbitrary"),
            ),
            cost_estimate=cost,
        )(x2, y2)

    partials = out[::SUBLANES, 0]              # one scalar per split
    return jnp.sum(partials).astype(out_dtype)


if __name__ == "__main__":
    # The original module flattened a densenet conv1 weight ([128, 928, 1, 1]).
    # Use a small, deterministic synthetic stand-in: a flattened
    # (64, 128, 1, 1) "conv weight" -> length-8192 vector (64 rows x 128 lanes,
    # no padding needed, exercises the single-step Pallas kernel path).
    key = jax.random.PRNGKey(0)
    w = jax.random.normal(key, (64, 128, 1, 1), dtype=jnp.float32)
    input1 = w.reshape(-1)
    input2 = w.reshape(-1)  # same tensor, as in the reference script

    result = tor_network(input1, input2)
    result = jax.block_until_ready(result)

    ref = jnp.dot(input1, input2)
    assert jnp.allclose(result, ref, rtol=1e-4, atol=1e-4), (result, ref)

    # Secondary correctness check of the multi-step / 2-split / padded path
    # (rows > 2 * MAX_BLOCK_ROWS, N not a multiple of 128).
    n_big = 2 * 2 * MAX_BLOCK_ROWS * LANES + 37
    v = jax.random.normal(jax.random.PRNGKey(0), (n_big,), dtype=jnp.float32)
    result_big = jax.block_until_ready(tor_network(v, v))
    ref_big = jnp.dot(v, v)
    assert jnp.allclose(result_big, ref_big, rtol=1e-3, atol=1e-3), (
        result_big, ref_big)

    print("KERNEL_OK")
</pallas_src>

<mosaic_0001>
module attributes {stable_mosaic.version = 11 : i64} {
  func.func @_dot_kernel_single_step(%arg0: i32, %arg1: memref<64x128xf32, #tpu.memory_space<vmem>>, %arg2: memref<64x128xf32, #tpu.memory_space<vmem>>, %arg3: memref<8x128xf32, #tpu.memory_space<vmem>>) attributes {dimension_semantics = [#tpu.dimension_semantics<parallel>], iteration_bounds = array<i64: 1>, scalar_prefetch = 0 : i64, scratch_operands = 0 : i64, tpu.core_type = #tpu.core_type<tc>, window_params = [{transform_indices = @transform_0, window_bounds = array<i64: 64, 128>}, {transform_indices = @transform_1, window_bounds = array<i64: 64, 128>}, {transform_indices = @transform_2, window_bounds = array<i64: 8, 128>}]} {
    %c0 = arith.constant 0 : index
    %c0_0 = arith.constant 0 : index
    %0 = vector.load %arg1[%c0, %c0_0] : memref<64x128xf32, #tpu.memory_space<vmem>>, vector<64x128xf32>
    %c0_1 = arith.constant 0 : index
    %c0_2 = arith.constant 0 : index
    %1 = vector.load %arg2[%c0_1, %c0_2] : memref<64x128xf32, #tpu.memory_space<vmem>>, vector<64x128xf32>
    %2 = arith.mulf %0, %1 : vector<64x128xf32>
    %3 = vector.shape_cast %2 : vector<64x128xf32> to vector<1x64x128xf32>
    %cst = arith.constant dense<0.000000e+00> : vector<1xf32>
    %4 = vector.multi_reduction <add>, %3, %cst [1, 2] : vector<1x64x128xf32> to vector<1xf32>
    %5 = vector.shape_cast %4 : vector<1xf32> to vector<1x1x1xf32>
    %6 = vector.extract %5[0, 0, 0] : f32 from vector<1x1x1xf32>
    %7 = vector.broadcast %6 : f32 to vector<8x128xf32>
    %c0_3 = arith.constant 0 : index
    %c0_4 = arith.constant 0 : index
    %8 = vector.load %arg3[%c0_3, %c0_4] : memref<8x128xf32, #tpu.memory_space<vmem>>, vector<8x128xf32>
    tpu.vector_store %arg3[%c0_3, %c0_4], %7 {strides = array<i32>} : memref<8x128xf32, #tpu.memory_space<vmem>>, vector<8x128xf32>,
    return
  }
  func.func @transform_0(%arg0: i32) -> (i32, i32) {
    %c0_i32 = arith.constant 0 : i32
    %c0_i32_0 = arith.constant 0 : i32
    return %arg0, %c0_i32 : i32, i32
  }
  func.func @transform_1(%arg0: i32) -> (i32, i32) {
    %c0_i32 = arith.constant 0 : i32
    %c0_i32_0 = arith.constant 0 : i32
    return %arg0, %c0_i32 : i32, i32
  }
  func.func @transform_2(%arg0: i32) -> (i32, i32) {
    %c0_i32 = arith.constant 0 : i32
    %c0_i32_0 = arith.constant 0 : i32
    return %arg0, %c0_i32 : i32, i32
  }
}

</mosaic_0001>

<llo_original>
// kernel: tpu_custom_call.1
$region0: #{tpu_custom_call.1}
  #allocation0 [shape = 'u32[]', space=smem, size = 0x4, offset = 0x4, fixed_abs, tag = 'smem constant byte address 0x4 - core index']
  #allocation1 [shape = 'u32[144,128]{1,0:T(1,128)}', space=vmem, size = 0x12000, scoped, tag = 'internal scratch']
  %s0 = inlined_call_operand.hbm [shape: f32[64,128], index: 0, kind: input, shape index: {}]
  %s1 = inlined_call_operand.hbm [shape: f32[64,128], index: 1, kind: input, shape index: {}]
  %s2 = inlined_call_operand.hbm [shape: f32[8,128], index: 2, kind: output, shape index: {}]
  %s3 = sld [smem:[#allocation0]]
  $region26: #{tpu_custom_call.1} parent=0
    _
  %s5 = ssub.s32 1, %s3
  %s6 = scalar_select 0, %s5, %s3
  $region1: #{tpu_custom_call.1} parent=0
    #allocation2 [shape = 'u8[32768]{0}', space=vmem, size = 0x8000, scoped, tag = 'input window, operand 0, single buffered']
    #allocation3 [shape = 's32[1]{0}', space=sflag, size = 0x4, scoped, tag = 'scoped memory for tpu_custom_call.1']
    #allocation4 [shape = 's32[1]{0}', space=sflag, size = 0x4, scoped, tag = 'scoped memory for tpu_custom_call.1']
    #allocation5 [shape = 'u8[32768]{0}', space=vmem, size = 0x8000, scoped, tag = 'input window, operand 1, single buffered']
    #allocation6 [shape = 's32[1]{0}', space=sflag, size = 0x4, scoped, tag = 'scoped memory for tpu_custom_call.1']
    #allocation7 [shape = 'u8[4096]{0}', space=vmem, size = 0x1000, scoped, tag = 'output window, operand 0, single buffered']
    %7 = vsyncpa [#allocation3], 0
    %8 = vsyncpa [#allocation6], 0
    %9 = vsyncpa [#allocation4], 0
    // Predicated region
    $region2: #{tpu_custom_call.1} parent=1 // pred_check
      _
    $region3: #{tpu_custom_call.1} parent=1 // pred_check_branch
      %11 = sbr.rel (0) target = $region5
    $region4: #{tpu_custom_call.1} parent=1 // pred_region
      %s13 = ssub.s32 1024, 1024
      %14 = vsyncadd [#allocation3], %s13
      %s15 = sshll.u32 [#allocation2], 4
      %s16 = int_to_ptr.vmem [resolvable:$true] %s15
      %21 = dma.hbm_to_vmem [thread:$0]  %s0, 1024, %s16, [#allocation3], 128, 128, 8
    $region5: #{tpu_custom_call.1} parent=1 // pred_fallthru
      _
    // Predicated region
    $region6: #{tpu_custom_call.1} parent=1 // pred_check
      _
    $region7: #{tpu_custom_call.1} parent=1 // pred_check_branch
      %23 = sbr.rel (0) target = $region9
    $region8: #{tpu_custom_call.1} parent=1 // pred_region
      %s25 = ssub.s32 1024, 1024
      %26 = vsyncadd [#allocation6], %s25
      %s27 = sshll.u32 [#allocation5], 4
      %s28 = int_to_ptr.vmem [resolvable:$true] %s27
      %33 = dma.hbm_to_vmem [thread:$0]  %s1, 1024, %s28, [#allocation6], 128, 128, 8
    $region9: #{tpu_custom_call.1} parent=1 // pred_fallthru
      _
    // Predicated region
    $region10: #{tpu_custom_call.1} parent=1 // pred_check
      _
    $region11: #{tpu_custom_call.1} parent=1 // pred_check_branch
      %35 = sbr.rel (0) target = $region13
    $region12: #{tpu_custom_call.1} parent=1 // pred_region
      %36 = dma.done [#allocation3], 1024
    $region13: #{tpu_custom_call.1} parent=1 // pred_fallthru
      _
    // Predicated region
    $region14: #{tpu_custom_call.1} parent=1 // pred_check
      _
    $region15: #{tpu_custom_call.1} parent=1 // pred_check_branch
      %38 = sbr.rel (0) target = $region17
    $region16: #{tpu_custom_call.1} parent=1 // pred_region
      %39 = dma.done [#allocation6], 1024
    $region17: #{tpu_custom_call.1} parent=1 // pred_fallthru
      _
    %v40 = vld [vmem:[#allocation2] sm:$0xff]
    %v41 = vld [vmem:[#allocation2 + $0x8] sm:$0xff]
    %v42 = vld [vmem:[#allocation2 + $0x10] sm:$0xff]
    %v43 = vld [vmem:[#allocation2 + $0x18] sm:$0xff]
    %v44 = vld [vmem:[#allocation2 + $0x20] sm:$0xff]
    %v45 = vld [vmem:[#allocation2 + $0x28] sm:$0xff]
    %v46 = vld [vmem:[#allocation2 + $0x30] sm:$0xff]
    %v47 = vld [vmem:[#allocation2 + $0x38] sm:$0xff]
    %v48 = vld [vmem:[#allocation5] sm:$0xff]
    %v49 = vld [vmem:[#allocation5 + $0x8] sm:$0xff]
    %v50 = vld [vmem:[#allocation5 + $0x10] sm:$0xff]
    %v51 = vld [vmem:[#allocation5 + $0x18] sm:$0xff]
    %v52 = vld [vmem:[#allocation5 + $0x20] sm:$0xff]
    %v53 = vld [vmem:[#allocation5 + $0x28] sm:$0xff]
    %v54 = vld [vmem:[#allocation5 + $0x30] sm:$0xff]
    %v55 = vld [vmem:[#allocation5 + $0x38] sm:$0xff]
    %v56 = vmul.f32 %v40, %v48
    %v57 = vmul.f32 %v41, %v49
    %v58 = vmul.f32 %v42, %v50
    %v59 = vmul.f32 %v43, %v51
    %v60 = vmul.f32 %v44, %v52
    %v61 = vmul.f32 %v45, %v53
    %v62 = vmul.f32 %v46, %v54
    %v63 = vmul.f32 %v47, %v55
    %v64 = vadd.f32 %v56, %v57
    %v65 = vadd.f32 %v64, %v58
    %v66 = vadd.f32 %v65, %v59
    %v67 = vadd.f32 %v66, %v60
    %v68 = vadd.f32 %v67, %v61
    %v69 = vadd.f32 %v68, %v62
    %v70 = vadd.f32 %v69, %v63
    %71 = vadd.xlane.f32.xlu0 %v70
    %v72 = vpop.xlane.xlu0 %71
    %v73 = vrot.slane %v72, 4
    %v74 = vadd.f32 %v72, %v73
    %v75 = vrot.slane %v74, 2
    %v76 = vadd.f32 %v74, %v75
    %v77 = vrot.slane %v76, 1
    %v78 = vadd.f32 %v76, %v77
    %s79 = vtos %v78
    %v80 = vstv %s79
    %81 = vst [vmem:[#allocation7] sm:$0xff] %v80
    // Predicated region
    $region18: #{tpu_custom_call.1} parent=1 // pred_check
      _
    $region19: #{tpu_custom_call.1} parent=1 // pred_check_branch
      %83 = sbr.rel (0) target = $region21
    $region20: #{tpu_custom_call.1} parent=1 // pred_region
      %s85 = ssub.s32 128, 128
      %86 = vsyncadd [#allocation4], %s85
      %s88 = sshll.u32 [#allocation7], 4
      %s89 = int_to_ptr.vmem [resolvable:$true] %s88
      %91 = dma.vmem_to_hbm [thread:$0]  %s89, 128, %s2, [#allocation4]
    $region21: #{tpu_custom_call.1} parent=1 // pred_fallthru
      _
    // Predicated region
    $region22: #{tpu_custom_call.1} parent=1 // pred_check
      _
    $region23: #{tpu_custom_call.1} parent=1 // pred_check_branch
      %93 = sbr.rel (0) target = $region25
    $region24: #{tpu_custom_call.1} parent=1 // pred_region
      %94 = dma.done [#allocation4], 128
    $region25: #{tpu_custom_call.1} parent=1 // pred_fallthru
      _
    %95 = vsyncpa [#allocation3], 1
    %96 = vsyncpa [#allocation6], 1
    %97 = vsyncpa [#allocation4], 1

</llo_original>
